<compile_context>
chip_gen: v6e
topology: v6e:2x2x1
jax: 0.10.0
libtpu: 0.0.40
codegen_flags: <defaults>
</compile_context>

<pallas_src>
import math

import jax
import jax.numpy as jnp
from jax.experimental import pallas as pl
from jax.experimental.pallas import tpu as pltpu


_TARGET_ROW_BLOCKS = 8           # aim for >= 8 balanced row blocks (pipelining + megacore)
_MAX_LANE_TILE = 2048            # cap on lane-axis tile for the split path
_MIN_LANE_TILE = 512             # never accept <512-lane strided DMA segments
_INPUT_BUFFERS = 3               # triple-buffer the strided split-path inputs
_SMALL_ALIGNED_BYTES = 256 * 1024      # below this, plain jnp wins (aligned case)
_SMALL_UNALIGNED_BYTES = 2 * 1024 * 1024  # below this, plain jnp wins (masked-store case)


def _cdiv(a, b):
    return -(-a // b)


def _round_up(a, m):
    return _cdiv(a, m) * m


def _sublane_pack(dtype) -> int:
    """Row-tile multiple so sub-32-bit dtypes stay sublane-packed."""
    itemsize = jnp.dtype(dtype).itemsize
    return max(8, 32 // itemsize)        # f32 -> 8, bf16 -> 16, int8/fp8 -> 32


def _tpu_vmem_params():
    """(vmem_limit_bytes, per_buffer_target_bytes), generation-aware."""
    cap = 64 * 1024 * 1024
    try:
        info = pltpu.get_tpu_info()
        cap = int(getattr(info, "vmem_capacity_bytes", cap))
    except Exception:
        pass
    limit = min(48 * 1024 * 1024, max(cap // 2, 16 * 1024 * 1024))
    if cap <= 64 * 1024 * 1024:          # v7x: 64 MiB physical per TensorCore
        return limit, (3 * 1024 * 1024) // 2
    return limit, 2 * 1024 * 1024        # v5e / v6e: 128 MiB physical


def _row_tile(rows, lane_elems, itemsize, pack, buffer_target):
    """Rows per tile: ~buffer_target bytes per buffer, >= _TARGET_ROW_BLOCKS blocks."""
    tm = buffer_target // max(lane_elems * itemsize, 1)
    tm = max(pack, (tm // pack) * pack)
    if rows > pack:
        balanced = _round_up(_cdiv(rows, _TARGET_ROW_BLOCKS), pack)
        tm = min(tm, max(pack, balanced))
    if tm >= rows:
        tm = rows                        # single full-extent block (legal)
    return tm


def _buffered_spec(block_shape, index_map, buffers):
    """BlockSpec with pipeline_mode=Buffered(n), falling back to the default."""
    if buffers is None:
        return pl.BlockSpec(block_shape, index_map)
    try:
        return pl.BlockSpec(block_shape, index_map, pipeline_mode=pl.Buffered(buffers))
    except TypeError:
        return pl.BlockSpec(block_shape, index_map)


def _glu_kernel_fused(x_ref, o_ref):
    # x_ref tile is (tm, 2*D); slice the two halves inside VMEM.  When D is a
    # 128-multiple the slice sits on a lane-tile boundary and is free; when it
    # is not, the relayout cost is accepted (that path is only taken for
    # moderately sized unaligned inputs).  Math in f32 for v5e bf16 accuracy.
    d = o_ref.shape[-1]
    a = x_ref[:, :d].astype(jnp.float32)
    g = x_ref[:, d:].astype(jnp.float32)
    o_ref[...] = (a * jax.nn.sigmoid(g)).astype(o_ref.dtype)


def _glu_kernel_split(a_ref, g_ref, o_ref):
    # Wide-D path: halves arrive via lane-offset index maps, no in-kernel slicing.
    a = a_ref[...].astype(jnp.float32)
    g = g_ref[...].astype(jnp.float32)
    o_ref[...] = (a * jax.nn.sigmoid(g)).astype(o_ref.dtype)


def glu_pallas(x, dim=-1):
    """GLU: split `x` in half along `dim`, return out * sigmoid(gate)."""
    ndim = x.ndim
    axis = dim % ndim
    shape = x.shape
    if shape[axis] % 2 != 0:
        raise ValueError("chunked dimension must be even")

    # Flatten everything from `axis` onward into the lane dimension (native
    # layout preserved; chunk(2, axis) == first/second half of that span).
    rows = int(math.prod(shape[:axis]))
    tail = int(math.prod(shape[axis + 1:]))
    d = (shape[axis] // 2) * tail
    two_d = 2 * d
    new_shape = shape[:axis] + (shape[axis] // 2,) + shape[axis + 1:]

    itemsize = jnp.dtype(x.dtype).itemsize
    total_bytes = rows * two_d * itemsize
    lane_aligned = (d % 128 == 0)

    # Small-input fast path: pallas_call fixed overhead (and masked stores /
    # unaligned gate slices) lose to XLA's fused elementwise kernel here.
    small_cutoff = _SMALL_ALIGNED_BYTES if lane_aligned else _SMALL_UNALIGNED_BYTES
    if total_bytes <= small_cutoff or rows == 0 or d == 0:
        out, gate = jnp.split(x, 2, axis=axis)
        return out * jax.nn.sigmoid(gate)

    x2 = x.reshape(rows, two_d)
    pack = _sublane_pack(x.dtype)
    vmem_limit, buffer_target = _tpu_vmem_params()
    out_shape2 = jax.ShapeDtypeStruct((rows, d), x.dtype)

    # Fused contiguous path unless even a minimum-height full-width (pack, 2*D)
    # tile would exceed ~2x the per-buffer budget.
    use_split = lane_aligned and (two_d * itemsize * pack > 2 * buffer_target)

    if not use_split:
        # ---- fused contiguous path (also covers D % 128 != 0, masked stores) ----
        tm = _row_tile(rows, two_d, itemsize, pack, buffer_target)
        grid_rows = _cdiv(rows, tm)
        out2 = pl.pallas_call(
            _glu_kernel_fused,
            out_shape=out_shape2,
            grid_spec=pltpu.PrefetchScalarGridSpec(
                num_scalar_prefetch=0,
                grid=(grid_rows,),
                in_specs=[pl.BlockSpec((tm, two_d), lambda i: (i, 0))],
                out_specs=pl.BlockSpec((tm, d), lambda i: (i, 0)),
            ),
            compiler_params=pltpu.CompilerParams(
                dimension_semantics=("parallel",),
                vmem_limit_bytes=vmem_limit,
            ),
        )(x2)
        return out2.reshape(new_shape)

    # ---- split two-input path: only for very wide, lane-aligned halves ---------
    # Lane tile: largest divisor of D that is a multiple of 128 within
    # [_MIN_LANE_TILE, _MAX_LANE_TILE]; if none exists, use the full half
    # (tn = D) and shrink tm instead of accepting tiny strided DMA segments.
    if d <= _MAX_LANE_TILE:
        tn = d
    else:
        tn = None
        for cand in range(_MAX_LANE_TILE, _MIN_LANE_TILE - 1, -128):
            if d % cand == 0:
                tn = cand
                break
        if tn is None:
            tn = d
    blocks_per_half = d // tn

    tm = _row_tile(rows, tn, itemsize, pack, buffer_target)
    grid_rows = _cdiv(rows, tm)

    # Keep triple-buffered inputs only if the pipeline comfortably fits VMEM.
    in_bufs = _INPUT_BUFFERS
    est_pipeline = (2 * in_bufs + 2) * tm * tn * itemsize
    if est_pipeline > vmem_limit // 2:
        in_bufs = None                   # default double buffering

    # Put the bigger parallel axis first so megacore splits the larger extent.
    lane_first = blocks_per_half > grid_rows
    if lane_first:
        grid = (blocks_per_half, grid_rows)
        out_map = lambda j, i: (i, j)
        gate_map = lambda j, i: (i, j + blocks_per_half)
    else:
        grid = (grid_rows, blocks_per_half)
        out_map = lambda i, j: (i, j)
        gate_map = lambda i, j: (i, j + blocks_per_half)

    out2 = pl.pallas_call(
        _glu_kernel_split,
        out_shape=out_shape2,
        grid_spec=pltpu.PrefetchScalarGridSpec(
            num_scalar_prefetch=0,
            grid=grid,
            in_specs=[
                _buffered_spec((tm, tn), out_map, in_bufs),
                _buffered_spec((tm, tn), gate_map, in_bufs),
            ],
            out_specs=pl.BlockSpec((tm, tn), out_map),
        ),
        compiler_params=pltpu.CompilerParams(
            dimension_semantics=("parallel", "parallel"),
            vmem_limit_bytes=vmem_limit,
        ),
    )(x2, x2)                            # same array twice; halves picked by index_map
    return out2.reshape(new_shape)


def _glu_ref(x, dim=-1):
    out, gate = jnp.split(x, 2, axis=dim)
    return out * jax.nn.sigmoid(gate)


if __name__ == "__main__":
    key = jax.random.PRNGKey(0)
    ks = jax.random.split(key, 6)

    # 1) Tiny conformer-like shape (hidden=64 -> half=32): jnp fast path.
    x = jax.random.normal(ks[0], (2, 8, 64), dtype=jnp.float32)
    y = glu_pallas(x, dim=-1)
    jax.block_until_ready(y)
    assert y.shape == (2, 8, 32)
    assert jnp.allclose(y, _glu_ref(x, -1), atol=1e-6, rtol=1e-6)

    # 2) Lane-aligned f32 (half=256): fused contiguous Pallas path, row grid.
    x = jax.random.normal(ks[1], (4, 64, 512), dtype=jnp.float32)
    y = glu_pallas(x, dim=-1)
    jax.block_until_ready(y)
    assert y.shape == (4, 64, 256)
    assert jnp.allclose(y, _glu_ref(x, -1), atol=1e-5, rtol=1e-5)

    # 3) Lane-aligned bf16: fused path with in-kernel f32 upcast.
    x = jax.random.normal(ks[2], (8, 64, 512), dtype=jnp.bfloat16)
    y = glu_pallas(x, dim=-1)
    jax.block_until_ready(y)
    assert y.shape == (8, 64, 256)
    assert jnp.allclose(y.astype(jnp.float32),
                        _glu_ref(x, -1).astype(jnp.float32),
                        atol=2e-2, rtol=2e-2)

    # 4) Non-last split dim (dim=1): flatten-from-axis handling, fused path.
    x = jax.random.normal(ks[3], (4, 8, 64, 128), dtype=jnp.float32)
    y = glu_pallas(x, dim=1)
    jax.block_until_ready(y)
    assert y.shape == (4, 4, 64, 128)
    assert jnp.allclose(y, _glu_ref(x, 1), atol=1e-5, rtol=1e-5)

    # 5) Half-width not a 128-multiple but large: masked-store fused path.
    x = jax.random.normal(ks[4], (4096, 192), dtype=jnp.float32)
    y = glu_pallas(x, dim=-1)
    jax.block_until_ready(y)
    assert y.shape == (4096, 96)
    assert jnp.allclose(y, _glu_ref(x, -1), atol=1e-5, rtol=1e-5)

    # 6) Very wide aligned half: two-input split path, lane axis first in grid.
    x = jax.random.normal(ks[5], (8, 262144), dtype=jnp.float32)
    y = glu_pallas(x, dim=-1)
    jax.block_until_ready(y)
    assert y.shape == (8, 131072)
    assert jnp.allclose(y, _glu_ref(x, -1), atol=1e-5, rtol=1e-5)

    print("KERNEL_OK")
</pallas_src>

<mosaic_0001>
module attributes {stable_mosaic.version = 11 : i64} {
  func.func @_glu_kernel_fused(%arg0: i32, %arg1: memref<32x512xf32, #tpu.memory_space<vmem>>, %arg2: memref<32x256xf32, #tpu.memory_space<vmem>>) attributes {dimension_semantics = [#tpu.dimension_semantics<parallel>], iteration_bounds = array<i64: 8>, scalar_prefetch = 0 : i64, scratch_operands = 0 : i64, tpu.core_type = #tpu.core_type<tc>, window_params = [{transform_indices = @transform_0, window_bounds = array<i64: 32, 512>}, {transform_indices = @transform_1, window_bounds = array<i64: 32, 256>}]} {
    %c0 = arith.constant 0 : index
    %c0_0 = arith.constant 0 : index
    %0 = vector.load %arg1[%c0, %c0_0] : memref<32x512xf32, #tpu.memory_space<vmem>>, vector<32x256xf32>
    %c0_1 = arith.constant 0 : index
    %c256 = arith.constant 256 : index
    %1 = vector.load %arg1[%c0_1, %c256] : memref<32x512xf32, #tpu.memory_space<vmem>>, vector<32x256xf32>
    %2 = arith.negf %1 : vector<32x256xf32>
    %3 = math.exp %2 : vector<32x256xf32>
    %cst = arith.constant 1.000000e+00 : f32
    %4 = vector.broadcast %cst : f32 to vector<32x256xf32>
    %5 = arith.addf %4, %3 : vector<32x256xf32>
    %6 = arith.divf %4, %5 : vector<32x256xf32>
    %7 = arith.mulf %0, %6 : vector<32x256xf32>
    %c0_2 = arith.constant 0 : index
    %c0_3 = arith.constant 0 : index
    %8 = vector.load %arg2[%c0_2, %c0_3] : memref<32x256xf32, #tpu.memory_space<vmem>>, vector<32x256xf32>
    tpu.vector_store %arg2[%c0_2, %c0_3], %7 {strides = array<i32>} : memref<32x256xf32, #tpu.memory_space<vmem>>, vector<32x256xf32>,
    return
  }
  func.func @transform_0(%arg0: i32) -> (i32, i32) {
    %c0_i32 = arith.constant 0 : i32
    %c0_i32_0 = arith.constant 0 : i32
    return %arg0, %c0_i32 : i32, i32
  }
  func.func @transform_1(%arg0: i32) -> (i32, i32) {
    %c0_i32 = arith.constant 0 : i32
    %c0_i32_0 = arith.constant 0 : i32
    return %arg0, %c0_i32 : i32, i32
  }
}

</mosaic_0001>

<llo_original>
// kernel: tpu_custom_call.1
$region0: #{tpu_custom_call.1}
  #allocation0 [shape = 'u32[]', space=smem, size = 0x4, offset = 0x4, fixed_abs, tag = 'smem constant byte address 0x4 - core index']
  #allocation1 [shape = 'u32[144,128]{1,0:T(1,128)}', space=vmem, size = 0x12000, scoped, tag = 'internal scratch']
  %s0 = inlined_call_operand.hbm [shape: f32[256,512], index: 0, kind: input, shape index: {}]
  %s1 = inlined_call_operand.hbm [shape: f32[256,256], index: 1, kind: output, shape index: {}]
  %s2 = sld [smem:[#allocation0]]
  $region41: #{tpu_custom_call.1} parent=0
    _
  %s4 = ssub.s32 1, %s2
  %s5 = scalar_select 0, %s4, %s2
  $region1: #{tpu_custom_call.1} parent=0
    #allocation2 [shape = 'u8[131072]{0}', space=vmem, size = 0x20000, scoped, tag = 'input window, operand 0']
    #allocation3 [shape = 's32[2]{0}', space=sflag, size = 0x8, scoped, tag = 'scoped memory for tpu_custom_call.1']
    #allocation4 [shape = 's32[2]{0}', space=sflag, size = 0x8, scoped, tag = 'scoped memory for tpu_custom_call.1']
    #allocation5 [shape = 'u8[65536]{0}', space=vmem, size = 0x10000, scoped, tag = 'output window, operand 0']
    %6 = vsyncpa [#allocation3], 0
    %s7 = scalar_lea.sflag [#allocation3], 1
    %8 = vsyncpa %s7, 0
    %9 = vsyncpa [#allocation4], 0
    %s10 = scalar_lea.sflag [#allocation4], 1
    %11 = vsyncpa %s10, 0
    loop: start=0, step=1, limit=10
    $region2: #{tpu_custom_call.1} parent=1 // loop_pre_header
      _
    $region3: #{tpu_custom_call.1} parent=1 // loop_header
      %s13 = sphi 0, %s17
      %p14 = scmp.ge.s32.totalorder %s13, 10
      %s23 = sphi 0, %s25
      %s26 = sphi 0, %s23
      %s27 = sphi 0, %s26
      %s43 = sphi 0, %s27
      %s49 = sphi 0, %s51
      %s52 = sphi 0, %s49
      %s53 = sphi 0, %s52
      %s69 = sphi 0, %s53
    $region4: #{tpu_custom_call.1} parent=1 // loop_header_branch
      %16 = sbr.rel (%p14) target = $region8
    $region5: #{tpu_custom_call.1} parent=1 // loop_body
      %s18 = ssub.s32 %s13, 1
      %s19 = ssub.s32 %s13, 2
      %s20 = sadd.s32 %s13, 1
      %s21 = ssub.s32 %s13, %s20
      %p22 = scmp.eq.s32.totalorder %s21, 0
      %s24 = sadd.s32 %s23, 1
      %s25 = scalar_select %p22, %s23, %s24
      %p28 = pneg %p22
      %p29 = scmp.eq.s32.totalorder %s13, 7
      %p30 = por %p28, %p29
      %p31 = scmp.ne.s32.totalorder %s23, %s26
      %p32 = scmp.eq.s32.totalorder %s13, 0
      %p33 = por %p31, %p32
      %p34 = scmp.ne.s32.totalorder %s23, %s26
      %p35 = scmp.eq.s32.totalorder %s18, 7
      %p36 = por %p34, %p35
      %p37 = scmp.ne.s32.totalorder %s26, %s27
      %p38 = scmp.eq.s32.totalorder %s18, 0
      %p39 = por %p37, %p38
      %p40 = scmp.ne.s32.totalorder %s26, %s27
      %p41 = scmp.eq.s32.totalorder %s19, 7
      %p42 = por %p40, %p41
      %p44 = scmp.ne.s32.totalorder %s27, %s43
      %p45 = scmp.eq.s32.totalorder %s19, 0
      %p46 = por %p44, %p45
      %s47 = ssub.s32 %s13, %s20
      %p48 = scmp.eq.s32.totalorder %s47, 0
      %s50 = sadd.s32 %s49, 1
      %s51 = scalar_select %p48, %s49, %s50
      %p54 = pneg %p48
      %p55 = scmp.eq.s32.totalorder %s13, 7
      %p56 = por %p54, %p55
      %p57 = scmp.ne.s32.totalorder %s49, %s52
      %p58 = scmp.eq.s32.totalorder %s13, 0
      %p59 = por %p57, %p58
      %p60 = scmp.ne.s32.totalorder %s49, %s52
      %p61 = scmp.eq.s32.totalorder %s18, 7
      %p62 = por %p60, %p61
      %p63 = scmp.ne.s32.totalorder %s52, %s53
      %p64 = scmp.eq.s32.totalorder %s18, 0
      %p65 = por %p63, %p64
      %p66 = scmp.ne.s32.totalorder %s52, %s53
      %p67 = scmp.eq.s32.totalorder %s19, 7
      %p68 = por %p66, %p67
      %p70 = scmp.ne.s32.totalorder %s53, %s69
      %p71 = scmp.eq.s32.totalorder %s19, 0
      %p72 = por %p70, %p71
      %p73 = scmp.le.s32.totalorder 1, %s13
      %p74 = scmp.lt.s32.totalorder %s13, 9
      %p75 = pnand %p73, %p74
      %p76 = pneg %p75
      // Predicated region
      $region9: #{tpu_custom_call.1} parent=5 // pred_check
        _
      $region10: #{tpu_custom_call.1} parent=5 // pred_check_branch
        %78 = sbr.rel (%p75) target = $region12
      $region11: #{tpu_custom_call.1} parent=5 // pred_region
        %s79 = ssub.s32 %s13, 1
      $region12: #{tpu_custom_call.1} parent=5 // pred_fallthru
        _
      %p80 = scmp.lt.s32.totalorder %s13, 8
      // Predicated region
      $region13: #{tpu_custom_call.1} parent=5 // pred_check
        %p81 = pneg %p80
      $region14: #{tpu_custom_call.1} parent=5 // pred_check_branch
        %83 = sbr.rel (%p81) target = $region16
      $region15: #{tpu_custom_call.1} parent=5 // pred_region
        // Predicated region
        $region17: #{tpu_custom_call.1} parent=15 // pred_check
          %p84 = pneg %p33
        $region18: #{tpu_custom_call.1} parent=15 // pred_check_branch
          %86 = sbr.rel (%p84) target = $region20
        $region19: #{tpu_custom_call.1} parent=15 // pred_region
          %s87 = sand.u32 %s23, 1
          %s88 = scalar_lea.sflag [#allocation3], %s87
          %s89 = sand.u32 %s23, 1
          %s90 = smul.addr %s89, 128
          %s91 = scalar_lea.vmem [#allocation2], %s90
          %s92 = smul.u32 4, %s13
          %s94 = ssub.s32 2048, 2048
          %95 = vsyncadd %s88, %s94
          %s96 = smul.addr %s92, 4
          %s97 = smul.addr %s96, 128
          %s98 = scalar_lea.hbm %s0, %s97
          %s99 = sshll.u32 %s91, 4
          %s100 = int_to_ptr.vmem [resolvable:$true] %s99
          %105 = dma.hbm_to_vmem [thread:$0]  %s98, 2048, %s100, %s88, 512, 512, 32
        $region20: #{tpu_custom_call.1} parent=15 // pred_fallthru
          _
      $region16: #{tpu_custom_call.1} parent=5 // pred_fallthru
        _
      %p106 = scmp.le.s32.totalorder 1, %s13
      %p107 = scmp.lt.s32.totalorder %s13, 9
      %p108 = pnand %p106, %p107
      %p109 = pneg %p108
      // Predicated region
      $region21: #{tpu_custom_call.1} parent=5 // pred_check
        _
      $region22: #{tpu_custom_call.1} parent=5 // pred_check_branch
        %111 = sbr.rel (%p108) target = $region24
      $region23: #{tpu_custom_call.1} parent=5 // pred_region
        %s112 = ssub.s32 %s13, 1
        %s113 = sand.u32 %s26, 1
        %s114 = scalar_lea.sflag [#allocation3], %s113
        %s115 = sand.u32 %s26, 1
        %s116 = smul.addr %s115, 128
        %s117 = scalar_lea.vmem [#allocation2], %s116
        // Predicated region
        $region25: #{tpu_custom_call.1} parent=23 // pred_check
          %p118 = pneg %p39
        $region26: #{tpu_custom_call.1} parent=23 // pred_check_branch
          %120 = sbr.rel (%p118) target = $region28
        $region27: #{tpu_custom_call.1} parent=23 // pred_region
          %121 = dma.done %s114, 2048
        $region28: #{tpu_custom_call.1} parent=23 // pred_fallthru
          _
        %s122 = sand.u32 %s26, 1
        %s123 = scalar_lea.sflag [#allocation3], %s122
        %s124 = sand.u32 %s26, 1
        %s125 = smul.addr %s124, 128
        %s126 = scalar_lea.vmem [#allocation2], %s125
        %p127 = pneg %p39
        %p128 = pneg %p36
        %p129 = pneg %p65
        %p130 = pneg %p62
        %s131 = sand.u32 %s52, 1
        %s132 = scalar_lea.sflag [#allocation4], %s131
        %s133 = sand.u32 %s52, 1
        %s134 = smul.addr %s133, 64
        %s135 = scalar_lea.vmem [#allocation5], %s134
        %s136 = smul.u32 4, %s18
        %s137 = smul.u32 4, %s18
        %v138 = vld [vmem:[%s117] sm:$0xff]
        %v139 = vld [vmem:[%s117 + $0x8] sm:$0xff]
        %v140 = vld [vmem:[%s117 + $0x20] sm:$0xff]
        %v141 = vld [vmem:[%s117 + $0x28] sm:$0xff]
        %v142 = vld [vmem:[%s117 + $0x40] sm:$0xff]
        %v143 = vld [vmem:[%s117 + $0x48] sm:$0xff]
        %v144 = vld [vmem:[%s117 + $0x60] sm:$0xff]
        %v145 = vld [vmem:[%s117 + $0x68] sm:$0xff]
        %v146 = vld [vmem:[%s117 + $0x10] sm:$0xff]
        %v147 = vld [vmem:[%s117 + $0x18] sm:$0xff]
        %v148 = vld [vmem:[%s117 + $0x30] sm:$0xff]
        %v149 = vld [vmem:[%s117 + $0x38] sm:$0xff]
        %v150 = vld [vmem:[%s117 + $0x50] sm:$0xff]
        %v151 = vld [vmem:[%s117 + $0x58] sm:$0xff]
        %v152 = vld [vmem:[%s117 + $0x70] sm:$0xff]
        %v153 = vld [vmem:[%s117 + $0x78] sm:$0xff]
        %v154 = vxor.u32 %v146, 2147483648
        %v155 = vxor.u32 %v147, 2147483648
        %v156 = vxor.u32 %v148, 2147483648
        %v157 = vxor.u32 %v149, 2147483648
        %v158 = vxor.u32 %v150, 2147483648
        %v159 = vxor.u32 %v151, 2147483648
        %v160 = vxor.u32 %v152, 2147483648
        %v161 = vxor.u32 %v153, 2147483648
        %v162 = vmul.f32 %v154, 1.442695
        %v163 = vpow.pop %v162
        %v164 = vmul.f32 %v155, 1.442695
        %v165 = vpow.pop %v164
        %v166 = vmul.f32 %v156, 1.442695
        %v167 = vpow.pop %v166
        %v168 = vmul.f32 %v157, 1.442695
        %v169 = vpow.pop %v168
        %v170 = vmul.f32 %v158, 1.442695
        %v171 = vpow.pop %v170
        %v172 = vmul.f32 %v159, 1.442695
        %v173 = vpow.pop %v172
        %v174 = vmul.f32 %v160, 1.442695
        %v175 = vpow.pop %v174
        %v176 = vmul.f32 %v161, 1.442695
        %v177 = vpow.pop %v176
        %v178 = vadd.f32 %v163, 1.0
        %v179 = vadd.f32 %v165, 1.0
        %v180 = vadd.f32 %v167, 1.0
        %v181 = vadd.f32 %v169, 1.0
        %v182 = vadd.f32 %v171, 1.0
        %v183 = vadd.f32 %v173, 1.0
        %v184 = vadd.f32 %v175, 1.0
        %v185 = vadd.f32 %v177, 1.0
        %v186 = vrcp.pop %v178
        %v187 = vmul.f32 1.0, %v186
        %v188 = vrcp.pop %v179
        %v189 = vmul.f32 1.0, %v188
        %v190 = vrcp.pop %v180
        %v191 = vmul.f32 1.0, %v190
        %v192 = vrcp.pop %v181
        %v193 = vmul.f32 1.0, %v192
        %v194 = vrcp.pop %v182
        %v195 = vmul.f32 1.0, %v194
        %v196 = vrcp.pop %v183
        %v197 = vmul.f32 1.0, %v196
        %v198 = vrcp.pop %v184
        %v199 = vmul.f32 1.0, %v198
        %v200 = vrcp.pop %v185
        %v201 = vmul.f32 1.0, %v200
        %v202 = vmul.f32 %v138, %v187
        %v203 = vmul.f32 %v139, %v189
        %v204 = vmul.f32 %v140, %v191
        %v205 = vmul.f32 %v141, %v193
        %v206 = vmul.f32 %v142, %v195
        %v207 = vmul.f32 %v143, %v197
        %v208 = vmul.f32 %v144, %v199
        %v209 = vmul.f32 %v145, %v201
        %210 = vst [vmem:[%s135] sm:$0xff] %v202
        %211 = vst [vmem:[%s135 + $0x8] sm:$0xff] %v203
        %212 = vst [vmem:[%s135 + $0x10] sm:$0xff] %v204
        %213 = vst [vmem:[%s135 + $0x18] sm:$0xff] %v205
        %214 = vst [vmem:[%s135 + $0x20] sm:$0xff] %v206
        %215 = vst [vmem:[%s135 + $0x28] sm:$0xff] %v207
        %216 = vst [vmem:[%s135 + $0x30] sm:$0xff] %v208
        %217 = vst [vmem:[%s135 + $0x38] sm:$0xff] %v209
        %s218 = sand.u32 %s52, 1
        %s219 = scalar_lea.sflag [#allocation4], %s218
        %s220 = sand.u32 %s52, 1
        %s221 = smul.addr %s220, 64
        %s222 = scalar_lea.vmem [#allocation5], %s221
        // Predicated region
        $region29: #{tpu_custom_call.1} parent=23 // pred_check
          %p223 = pneg %p62
        $region30: #{tpu_custom_call.1} parent=23 // pred_check_branch
          %225 = sbr.rel (%p223) target = $region32
        $region31: #{tpu_custom_call.1} parent=23 // pred_region
          %s226 = smul.u32 4, %s18
          %s228 = ssub.s32 1024, 1024
          %229 = vsyncadd %s219, %s228
          %s230 = smul.addr %s226, 2
          %s231 = smul.addr %s230, 128
          %s232 = scalar_lea.hbm %s1, %s231
          %s233 = sshll.u32 %s222, 4
          %s234 = int_to_ptr.vmem [resolvable:$true] %s233
          %239 = dma.vmem_to_hbm [thread:$0]  %s234, 1024, %s232, %s219, 256, 256, 16
        $region32: #{tpu_custom_call.1} parent=23 // pred_fallthru
          _
      $region24: #{tpu_custom_call.1} parent=5 // pred_fallthru
        _
      %p240 = scmp.le.s32.totalorder 2, %s13
      // Predicated region
      $region33: #{tpu_custom_call.1} parent=5 // pred_check
        %p241 = pneg %p240
      $region34: #{tpu_custom_call.1} parent=5 // pred_check_branch
        %243 = sbr.rel (%p241) target = $region36
      $region35: #{tpu_custom_call.1} parent=5 // pred_region
        %s244 = ssub.s32 %s13, 2
        // Predicated region
        $region37: #{tpu_custom_call.1} parent=35 // pred_check
          %p245 = pneg %p68
        $region38: #{tpu_custom_call.1} parent=35 // pred_check_branch
          %247 = sbr.rel (%p245) target = $region40
        $region39: #{tpu_custom_call.1} parent=35 // pred_region
          %s248 = sand.u32 %s53, 1
          %s249 = scalar_lea.sflag [#allocation4], %s248
          %s250 = sand.u32 %s53, 1
          %s251 = smul.addr %s250, 64
          %s252 = scalar_lea.vmem [#allocation5], %s251
          %253 = dma.done %s249, 1024
        $region40: #{tpu_custom_call.1} parent=35 // pred_fallthru
          _
      $region36: #{tpu_custom_call.1} parent=5 // pred_fallthru
        _
    $region6: #{tpu_custom_call.1} parent=1 // loop_footer
      %s17 = sadd.s32 1, %s13
    $region7: #{tpu_custom_call.1} parent=1 // loop_footer_branch
      %12 = sbr.rel target = $region3
    $region8: #{tpu_custom_call.1} parent=1 // loop_exit
      _
    %254 = vsyncpa [#allocation3], 1
    %s255 = scalar_lea.sflag [#allocation3], 1
    %256 = vsyncpa %s255, 1
    %257 = vsyncpa [#allocation4], 1
    %s258 = scalar_lea.sflag [#allocation4], 1
    %259 = vsyncpa %s258, 1

</llo_original>
